<compile_context>
chip_gen: v6e
topology: v6e:2x2x1
jax: 0.10.0
libtpu: 0.0.40
codegen_flags: <defaults>
</compile_context>

<pallas_src>
import jax
import jax.numpy as jnp
from jax.experimental import pallas as pl
from jax.experimental.pallas import tpu as pltpu


_HIDDEN = 512  # fixed by the module (fc1 out features / fc2 in features)


def cell_encoder_kernel(x_ref, wc_ref, cb_ref, w1_ref, b1_ref, w2_ref, b2_ref, out_ref):
    # x_ref  : (TB, S*D)   f32  VMEM  -- lane-dense flattened input tile (streamed)
    # wc_ref : (S*D, S)    bf16 VMEM  -- block-diagonal conv kernel (conv as MXU dot), resident
    # cb_ref : (1,)        f32  SMEM  -- conv bias (scalar)
    # w1_ref : (S, H)      bf16 VMEM  -- resident
    # b1_ref : (1, H)      f32  VMEM
    # w2_ref : (H, O_pad)  bf16 VMEM  -- resident
    # b2_ref : (1, O_pad)  f32  VMEM
    # out_ref: (TB, O_pad) f32  VMEM  -- lane-dense store
    x = x_ref[...]                                   # (TB, S*D) f32
    cb = cb_ref[0]                                   # scalar from SMEM

    # --- conv1x(D): block-diagonal matmul on the MXU (bf16 operands, f32 acc) + bias, ReLU ---
    h = jnp.dot(x.astype(jnp.bfloat16), wc_ref[...],
                preferred_element_type=jnp.float32) + cb             # (TB, S)
    h = jnp.maximum(h, 0.0)

    # --- fc1: (TB, S) @ (S, H) + b1, ReLU (MXU, bf16 in / f32 acc) ---
    y1 = jnp.dot(h.astype(jnp.bfloat16), w1_ref[...],
                 preferred_element_type=jnp.float32) + b1_ref[...]   # (TB, H)
    y1 = jnp.maximum(y1, 0.0)

    # --- dropout1: eval-mode identity ---
    # TODO(synk): training-mode dropout (pltpu.prng_seed + prng_random_bits mask) not implemented.

    # --- fc2: (TB, H) @ (H, O_pad) + b2 (MXU), lane-dense store ---
    y2 = jnp.dot(y1.astype(jnp.bfloat16), w2_ref[...],
                 preferred_element_type=jnp.float32) + b2_ref[...]   # (TB, O_pad)
    out_ref[...] = y2.astype(out_ref.dtype)


def _block_diag_conv_weight(conv_w, S, D, dtype):
    # W[s*D + d, s] = conv_w[d]  =>  x.reshape(B, S*D) @ W == per-row dot of x[:, s, :] with conv_w.
    eye = jnp.eye(S, dtype=jnp.float32)                      # (S, S)
    w = eye[:, None, :] * conv_w.reshape(D).astype(jnp.float32)[None, :, None]  # (S, D, S)
    return w.reshape(S * D, S).astype(dtype)


def _pick_batch_tile(B):
    # Big tiles amortize the ~0.35 us per-step overhead; keep >= 2 grid steps when B > 256 so
    # v7x's 2 TensorCores both get work; make TB a multiple of 256 (v6e/v7x MXU is 2x256^2).
    # VMEM is not a constraint: < ~8 MiB working set at TB=2048 vs >= 32 MiB scoped default.
    if B <= 256:
        return B
    half = -(-B // 2)                     # ceil(B / 2)
    tb = -(-half // 256) * 256            # round up to a multiple of 256
    return min(2048, tb)


@jax.jit
def _cell_encoder_pallas(x, conv_w, conv_b, fc1_w, fc1_b, fc2_w, fc2_b):
    B, S, D = x.shape
    H = fc1_w.shape[1]
    O = fc2_w.shape[1]

    # Lane-dense output width (multiple of 128); pad fc2 weight/bias with zeros.
    O_pad = ((O + 127) // 128) * 128
    if O_pad != O:
        fc2_w = jnp.pad(fc2_w, ((0, 0), (0, O_pad - O)))
        fc2_b = jnp.pad(fc2_b, ((0, 0), (0, O_pad - O)))

    # Lane-dense input: flatten (S, D) -> S*D so x vregs use the full 128-lane width and the conv
    # becomes a single MXU dot (frees the VPU/XLU entirely).
    SD = S * D
    x_flat = x.reshape(B, SD)

    # bf16 weights for the MXU (f32 accumulation preserved in-kernel); biases stay f32.
    wc = _block_diag_conv_weight(conv_w, S, D, jnp.bfloat16)         # (SD, S)
    w1 = fc1_w.astype(jnp.bfloat16)                                  # (S, H)
    w2 = fc2_w.astype(jnp.bfloat16)                                  # (H, O_pad)
    cb = conv_b.reshape(1).astype(jnp.float32)
    b1 = fc1_b.reshape(1, H).astype(jnp.float32)
    b2 = fc2_b.reshape(1, O_pad).astype(jnp.float32)

    TB = _pick_batch_tile(B)
    grid = (pl.cdiv(B, TB),)

    flops = 2 * B * (SD * S + S * H + H * O_pad)
    bytes_accessed = (4 * x_flat.size
                      + 2 * (wc.size + w1.size + w2.size)
                      + 4 * (cb.size + b1.size + b2.size)
                      + 4 * B * O_pad)

    out_pad = pl.pallas_call(
        cell_encoder_kernel,
        out_shape=jax.ShapeDtypeStruct((B, O_pad), jnp.float32),
        grid=grid,
        in_specs=[
            # x: streamed per batch tile, double-buffered by the pipeline.
            # TODO(synk): on v5e, if xprof shows the x DMA still exposed, add
            #             pipeline_mode=pl.Buffered(3) to this spec.
            pl.BlockSpec((TB, SD), lambda i: (i, 0)),
            pl.BlockSpec((SD, S), lambda i: (0, 0)),             # conv block-diag kernel: resident
            pl.BlockSpec(memory_space=pltpu.MemorySpace.SMEM),   # conv bias: scalar in SMEM
            pl.BlockSpec((S, H), lambda i: (0, 0)),              # fc1_w: resident
            pl.BlockSpec((1, H), lambda i: (0, 0)),              # fc1_b: resident
            pl.BlockSpec((H, O_pad), lambda i: (0, 0)),          # fc2_w: resident
            pl.BlockSpec((1, O_pad), lambda i: (0, 0)),          # fc2_b: resident
        ],
        out_specs=pl.BlockSpec((TB, O_pad), lambda i: (i, 0)),
        compiler_params=pltpu.CompilerParams(
            dimension_semantics=("parallel",)),
        cost_estimate=pl.CostEstimate(
            flops=flops, transcendentals=0, bytes_accessed=bytes_accessed),
    )(x_flat, wc, cb, w1, b1, w2, b2)

    # NOTE: for very large B, prefer consuming the padded (B, O_pad) output directly (or fusing
    # this slice into the consumer) to avoid an extra post-kernel HBM pass.
    return out_pad[:, :O]


@jax.jit
def _cell_encoder_xla(x, conv_w, conv_b, fc1_w, fc1_b, fc2_w, fc2_b):
    # Plain XLA path for tiny batches where pallas_call fixed overhead dominates.
    h = jnp.sum(x * conv_w.reshape(1, 1, -1), axis=-1) + conv_b.reshape(())
    h = jnp.maximum(h, 0.0)
    y1 = jnp.maximum(h @ fc1_w + fc1_b, 0.0)
    return y1 @ fc2_w + fc2_b


def cell_encoder(x, conv_w, conv_b, fc1_w, fc1_b, fc2_w, fc2_b, *, force_pallas=False):
    B = x.shape[0]
    if B <= 64 and not force_pallas:
        return _cell_encoder_xla(x, conv_w, conv_b, fc1_w, fc1_b, fc2_w, fc2_b)
    return _cell_encoder_pallas(x, conv_w, conv_b, fc1_w, fc1_b, fc2_w, fc2_b)


def reference(x, conv_w, conv_b, fc1_w, fc1_b, fc2_w, fc2_b):
    h = jnp.sum(x * conv_w.reshape(1, 1, -1), axis=-1) + conv_b.reshape(())
    h = jnp.maximum(h, 0.0)
    y1 = jnp.maximum(h @ fc1_w + fc1_b, 0.0)
    return y1 @ fc2_w + fc2_b


if __name__ == "__main__":
    # Small shapes consistent with the module:
    #   dim=32, max_seq_len=8, output_dim=32, batch=2, hidden=512 (fixed by module)
    B, S, D, O, H = 2, 8, 32, 32, _HIDDEN

    key = jax.random.PRNGKey(0)
    kx, k1, k2, k3, k4, k5, k6, kx2 = jax.random.split(key, 8)

    x = jax.random.normal(kx, (B, S, D), dtype=jnp.float32)

    # Deterministic synthetic parameters (shapes match the PyTorch module, pre-transposed).
    conv_w = jax.random.normal(k1, (1, D), dtype=jnp.float32) * 0.1    # Conv2d(1,1,(1,D)) kernel
    conv_b = jax.random.normal(k2, (1,), dtype=jnp.float32) * 0.1      # conv bias (scalar)
    fc1_w = jax.random.normal(k3, (S, H), dtype=jnp.float32) * 0.05    # Linear(S -> 512), (in, out)
    fc1_b = jax.random.normal(k4, (1, H), dtype=jnp.float32) * 0.05
    fc2_w = jax.random.normal(k5, (H, O), dtype=jnp.float32) * 0.05    # Linear(512 -> O), (in, out)
    fc2_b = jax.random.normal(k6, (1, O), dtype=jnp.float32) * 0.05

    # Force the Pallas path at the tiny demo size (normally B<=64 dispatches to plain XLA).
    out = cell_encoder(x, conv_w, conv_b, fc1_w, fc1_b, fc2_w, fc2_b, force_pallas=True)
    out = jax.block_until_ready(out)
    ref = reference(x, conv_w, conv_b, fc1_w, fc1_b, fc2_w, fc2_b)
    assert out.shape == (B, O), out.shape
    # bf16 MXU operands with f32 accumulation -> compare at a bf16-appropriate tolerance.
    assert jnp.allclose(out, ref, atol=2e-2, rtol=2e-2), "mismatch vs reference (small batch)"

    # Also exercise the multi-block streaming path (grid >= 2 blocks).
    B2 = 512
    x2 = jax.random.normal(kx2, (B2, S, D), dtype=jnp.float32)
    out2 = jax.block_until_ready(
        cell_encoder(x2, conv_w, conv_b, fc1_w, fc1_b, fc2_w, fc2_b))
    ref2 = reference(x2, conv_w, conv_b, fc1_w, fc1_b, fc2_w, fc2_b)
    assert out2.shape == (B2, O), out2.shape
    assert jnp.allclose(out2, ref2, atol=2e-2, rtol=2e-2), "mismatch vs reference (B=512)"

    print("KERNEL_OK")
</pallas_src>

<mosaic_0001>
module attributes {stable_mosaic.version = 11 : i64} {
  func.func @cell_encoder_kernel(%arg0: i32, %arg1: memref<2x256xf32, #tpu.memory_space<vmem>>, %arg2: memref<256x8xbf16, #tpu.memory_space<vmem>>, %arg3: memref<1xf32, #tpu.memory_space<smem>>, %arg4: memref<8x512xbf16, #tpu.memory_space<vmem>>, %arg5: memref<1x512xf32, #tpu.memory_space<vmem>>, %arg6: memref<512x128xbf16, #tpu.memory_space<vmem>>, %arg7: memref<1x128xf32, #tpu.memory_space<vmem>>, %arg8: memref<2x128xf32, #tpu.memory_space<vmem>>) attributes {dimension_semantics = [#tpu.dimension_semantics<parallel>], iteration_bounds = array<i64: 1>, scalar_prefetch = 0 : i64, scratch_operands = 0 : i64, tpu.core_type = #tpu.core_type<tc>, window_params = [{transform_indices = @transform_0, window_bounds = array<i64: 2, 256>}, {pipeline_mode = #tpu.pipeline_mode<synchronous>, transform_indices = @transform_1, window_bounds = array<i64: 256, 8>}, {transform_indices = @transform_2, window_bounds = array<i64: 1>}, {pipeline_mode = #tpu.pipeline_mode<synchronous>, transform_indices = @transform_3, window_bounds = array<i64: 8, 512>}, {pipeline_mode = #tpu.pipeline_mode<synchronous>, transform_indices = @transform_4, window_bounds = array<i64: 1, 512>}, {pipeline_mode = #tpu.pipeline_mode<synchronous>, transform_indices = @transform_5, window_bounds = array<i64: 512, 128>}, {pipeline_mode = #tpu.pipeline_mode<synchronous>, transform_indices = @transform_6, window_bounds = array<i64: 1, 128>}, {transform_indices = @transform_7, window_bounds = array<i64: 2, 128>}]} {
    %c0 = arith.constant 0 : index
    %c0_0 = arith.constant 0 : index
    %0 = vector.load %arg1[%c0, %c0_0] : memref<2x256xf32, #tpu.memory_space<vmem>>, vector<2x256xf32>
    %c0_1 = arith.constant 0 : index
    %1 = memref.load %arg3[%c0_1] : memref<1xf32, #tpu.memory_space<smem>>
    %2 = arith.truncf %0 : vector<2x256xf32> to vector<2x256xbf16>
    %c0_2 = arith.constant 0 : index
    %c0_3 = arith.constant 0 : index
    %3 = vector.load %arg2[%c0_2, %c0_3] : memref<256x8xbf16, #tpu.memory_space<vmem>>, vector<256x8xbf16>
    %cst = arith.constant dense<0.000000e+00> : vector<2x8xf32>
    %4 = tpu.matmul %2, %3, %cst {dimension_numbers = #tpu.dot_dimension_numbers<[1], [0], [0], [1], [0, 0, 1, 1], [], []>} : vector<2x256xbf16>, vector<256x8xbf16>, vector<2x8xf32> -> vector<2x8xf32>
    %5 = vector.broadcast %1 : f32 to vector<2x8xf32>
    %6 = arith.addf %4, %5 : vector<2x8xf32>
    %cst_4 = arith.constant 0.000000e+00 : f32
    %7 = vector.broadcast %cst_4 : f32 to vector<2x8xf32>
    %8 = arith.maximumf %6, %7 : vector<2x8xf32>
    %9 = arith.truncf %8 : vector<2x8xf32> to vector<2x8xbf16>
    %c0_5 = arith.constant 0 : index
    %c0_6 = arith.constant 0 : index
    %10 = vector.load %arg4[%c0_5, %c0_6] : memref<8x512xbf16, #tpu.memory_space<vmem>>, vector<8x512xbf16>
    %cst_7 = arith.constant dense<0.000000e+00> : vector<2x512xf32>
    %11 = tpu.matmul %9, %10, %cst_7 {dimension_numbers = #tpu.dot_dimension_numbers<[1], [0], [0], [1], [0, 0, 1, 1], [], []>} : vector<2x8xbf16>, vector<8x512xbf16>, vector<2x512xf32> -> vector<2x512xf32>
    %c0_8 = arith.constant 0 : index
    %c0_9 = arith.constant 0 : index
    %12 = vector.load %arg5[%c0_8, %c0_9] : memref<1x512xf32, #tpu.memory_space<vmem>>, vector<1x512xf32>
    %13 = vector.broadcast %12 : vector<1x512xf32> to vector<2x512xf32>
    %14 = arith.addf %11, %13 : vector<2x512xf32>
    %cst_10 = arith.constant 0.000000e+00 : f32
    %15 = vector.broadcast %cst_10 : f32 to vector<2x512xf32>
    %16 = arith.maximumf %14, %15 : vector<2x512xf32>
    %17 = arith.truncf %16 : vector<2x512xf32> to vector<2x512xbf16>
    %c0_11 = arith.constant 0 : index
    %c0_12 = arith.constant 0 : index
    %18 = vector.load %arg6[%c0_11, %c0_12] : memref<512x128xbf16, #tpu.memory_space<vmem>>, vector<512x128xbf16>
    %cst_13 = arith.constant dense<0.000000e+00> : vector<2x128xf32>
    %19 = tpu.matmul %17, %18, %cst_13 {dimension_numbers = #tpu.dot_dimension_numbers<[1], [0], [0], [1], [0, 0, 1, 1], [], []>} : vector<2x512xbf16>, vector<512x128xbf16>, vector<2x128xf32> -> vector<2x128xf32>
    %c0_14 = arith.constant 0 : index
    %c0_15 = arith.constant 0 : index
    %20 = vector.load %arg7[%c0_14, %c0_15] : memref<1x128xf32, #tpu.memory_space<vmem>>, vector<1x128xf32>
    %21 = vector.broadcast %20 : vector<1x128xf32> to vector<2x128xf32>
    %22 = arith.addf %19, %21 : vector<2x128xf32>
    %c0_16 = arith.constant 0 : index
    %c0_17 = arith.constant 0 : index
    %23 = vector.load %arg8[%c0_16, %c0_17] : memref<2x128xf32, #tpu.memory_space<vmem>>, vector<2x128xf32>
    tpu.vector_store %arg8[%c0_16, %c0_17], %22 {strides = array<i32>} : memref<2x128xf32, #tpu.memory_space<vmem>>, vector<2x128xf32>,
    return
  }
  func.func @transform_0(%arg0: i32) -> (i32, i32) {
    %c0_i32 = arith.constant 0 : i32
    %c0_i32_0 = arith.constant 0 : i32
    return %arg0, %c0_i32 : i32, i32
  }
  func.func @transform_1(%arg0: i32) -> (i32, i32) {
    %c0_i32 = arith.constant 0 : i32
    %c0_i32_0 = arith.constant 0 : i32
    %c0_i32_1 = arith.constant 0 : i32
    return %c0_i32, %c0_i32_0 : i32, i32
  }
  func.func @transform_2(%arg0: i32) -> i32 {
    %c0_i32 = arith.constant 0 : i32
    %c0_i32_0 = arith.constant 0 : i32
    return %c0_i32 : i32
  }
  func.func @transform_3(%arg0: i32) -> (i32, i32) {
    %c0_i32 = arith.constant 0 : i32
    %c0_i32_0 = arith.constant 0 : i32
    %c0_i32_1 = arith.constant 0 : i32
    return %c0_i32, %c0_i32_0 : i32, i32
  }
  func.func @transform_4(%arg0: i32) -> (i32, i32) {
    %c0_i32 = arith.constant 0 : i32
    %c0_i32_0 = arith.constant 0 : i32
    %c0_i32_1 = arith.constant 0 : i32
    return %c0_i32, %c0_i32_0 : i32, i32
  }
  func.func @transform_5(%arg0: i32) -> (i32, i32) {
    %c0_i32 = arith.constant 0 : i32
    %c0_i32_0 = arith.constant 0 : i32
    %c0_i32_1 = arith.constant 0 : i32
    return %c0_i32, %c0_i32_0 : i32, i32
  }
  func.func @transform_6(%arg0: i32) -> (i32, i32) {
    %c0_i32 = arith.constant 0 : i32
    %c0_i32_0 = arith.constant 0 : i32
    %c0_i32_1 = arith.constant 0 : i32
    return %c0_i32, %c0_i32_0 : i32, i32
  }
  func.func @transform_7(%arg0: i32) -> (i32, i32) {
    %c0_i32 = arith.constant 0 : i32
    %c0_i32_0 = arith.constant 0 : i32
    return %arg0, %c0_i32 : i32, i32
  }
}

</mosaic_0001>

<llo_original>
// kernel: _cell_encoder_pallas.1
$region0: #{_cell_encoder_pallas.1}
  #allocation0 [shape = 'u32[]', space=smem, size = 0x4, offset = 0x4, fixed_abs, tag = 'smem constant byte address 0x4 - core index']
  #allocation1 [shape = 'u32[144,128]{1,0:T(1,128)}', space=vmem, size = 0x12000, scoped, tag = 'internal scratch']
  #allocation2 [shape = 'f32[1]{0:T(128)S(6)}', space=smem, size = 0x200, scoped, tag = 'scoped memory for _cell_encoder_pallas.1']
  %s0 = inlined_call_operand.vmem [shape: f32[2,256], index: 0, kind: input, shape index: {}]
  %s1 = inlined_call_operand.vmem [shape: bf16[256,8], index: 1, kind: input, shape index: {}]
  %s2 = inlined_call_operand.<no memory space> [shape: f32[1], index: 2, kind: input, shape index: {}]
  %s3 = inlined_call_operand.vmem [shape: bf16[8,512], index: 3, kind: input, shape index: {}]
  %s4 = inlined_call_operand.vmem [shape: f32[1,512], index: 4, kind: input, shape index: {}]
  %s5 = inlined_call_operand.vmem [shape: bf16[512,128], index: 5, kind: input, shape index: {}]
  %s6 = inlined_call_operand.vmem [shape: f32[1,128], index: 6, kind: input, shape index: {}]
  %s7 = inlined_call_operand.hbm [shape: f32[2,128], index: 7, kind: output, shape index: {}]
  %s8 = sld [smem:[#allocation0]]
  $region38: #{_cell_encoder_pallas.1} parent=0
    _
  %s10 = ssub.s32 1, %s8
  %s11 = scalar_select 0, %s10, %s8
  %12 = sst [smem:[#allocation2]] %s2
  $region1: #{_cell_encoder_pallas.1} parent=0
    #allocation3 [shape = 'u8[1024]{0}', space=vmem, size = 0x400, scoped, tag = 'output window, operand 0, single buffered']
    #allocation4 [shape = 's32[1]{0}', space=sflag, size = 0x4, scoped, tag = 'scoped memory for _cell_encoder_pallas.1']
    %13 = vsyncpa [#allocation4], 0
    // Predicated region
    $region2: #{_cell_encoder_pallas.1} parent=1 // pred_check
      _
    $region3: #{_cell_encoder_pallas.1} parent=1 // pred_check_branch
      %15 = sbr.rel (0) target = $region5
    $region4: #{_cell_encoder_pallas.1} parent=1 // pred_region
      _
    $region5: #{_cell_encoder_pallas.1} parent=1 // pred_fallthru
      _
    // Predicated region
    $region6: #{_cell_encoder_pallas.1} parent=1 // pred_check
      _
    $region7: #{_cell_encoder_pallas.1} parent=1 // pred_check_branch
      %17 = sbr.rel (0) target = $region9
    $region8: #{_cell_encoder_pallas.1} parent=1 // pred_region
      _
    $region9: #{_cell_encoder_pallas.1} parent=1 // pred_fallthru
      _
    // Predicated region
    $region10: #{_cell_encoder_pallas.1} parent=1 // pred_check
      _
    $region11: #{_cell_encoder_pallas.1} parent=1 // pred_check_branch
      %19 = sbr.rel (0) target = $region13
    $region12: #{_cell_encoder_pallas.1} parent=1 // pred_region
      _
    $region13: #{_cell_encoder_pallas.1} parent=1 // pred_fallthru
      _
    // Predicated region
    $region14: #{_cell_encoder_pallas.1} parent=1 // pred_check
      _
    $region15: #{_cell_encoder_pallas.1} parent=1 // pred_check_branch
      %21 = sbr.rel (0) target = $region17
    $region16: #{_cell_encoder_pallas.1} parent=1 // pred_region
      _
    $region17: #{_cell_encoder_pallas.1} parent=1 // pred_fallthru
      _
    // Predicated region
    $region18: #{_cell_encoder_pallas.1} parent=1 // pred_check
      _
    $region19: #{_cell_encoder_pallas.1} parent=1 // pred_check_branch
      %23 = sbr.rel (0) target = $region21
    $region20: #{_cell_encoder_pallas.1} parent=1 // pred_region
      _
    $region21: #{_cell_encoder_pallas.1} parent=1 // pred_fallthru
      _
    // Predicated region
    $region22: #{_cell_encoder_pallas.1} parent=1 // pred_check
      _
    $region23: #{_cell_encoder_pallas.1} parent=1 // pred_check_branch
      %25 = sbr.rel (0) target = $region25
    $region24: #{_cell_encoder_pallas.1} parent=1 // pred_region
      _
    $region25: #{_cell_encoder_pallas.1} parent=1 // pred_fallthru
      _
    // Predicated region
    $region26: #{_cell_encoder_pallas.1} parent=1 // pred_check
      _
    $region27: #{_cell_encoder_pallas.1} parent=1 // pred_check_branch
      %27 = sbr.rel (0) target = $region29
    $region28: #{_cell_encoder_pallas.1} parent=1 // pred_region
      _
    $region29: #{_cell_encoder_pallas.1} parent=1 // pred_fallthru
      _
    %v29 = vld [vmem:[%s0] sm:$0xf]
    %s30 = sld [smem:[#allocation2]]
    %v33 = vunpack.c.l.s4 1983009808
    %v34 = vunpack.c.0.s8 %v33
    %v35 = vlaneseq
    %v36 = vshrl.u32 %v35, 7
    %v37 = vsub.s32 %v34, %v36
    %v38 = vrot.slane %v29, %v37
    %v39 = vcombine.high %v38, %v38
    %v42 = vpack.c.bf16 %v38, %v38
    %v43 = vpack.c.bf16 %v39, %v39
    %v44 = vld [vmem:[%s1] sm:$0xf]
    %v45 = vld [vmem:[%s1 + $0x4] sm:$0xf]
    %v46 = vld [vmem:[%s1 + $0x8] sm:$0xf]
    %v47 = vld [vmem:[%s1 + $0xc] sm:$0xf]
    %v48 = vld [vmem:[%s1 + $0x10] sm:$0xf]
    %v49 = vld [vmem:[%s1 + $0x14] sm:$0xf]
    %v50 = vld [vmem:[%s1 + $0x18] sm:$0xf]
    %v51 = vld [vmem:[%s1 + $0x1c] sm:$0xf]
    %v52 = vld [vmem:[%s1 + $0x20] sm:$0xf]
    %v53 = vld [vmem:[%s1 + $0x24] sm:$0xf]
    %v54 = vld [vmem:[%s1 + $0x28] sm:$0xf]
    %v55 = vld [vmem:[%s1 + $0x2c] sm:$0xf]
    %v56 = vld [vmem:[%s1 + $0x30] sm:$0xf]
    %v57 = vld [vmem:[%s1 + $0x34] sm:$0xf]
    %v58 = vld [vmem:[%s1 + $0x38] sm:$0xf]
    %v59 = vld [vmem:[%s1 + $0x3c] sm:$0xf]
    %v60 = vld [vmem:[%s1 + $0x40] sm:$0xf]
    %v61 = vld [vmem:[%s1 + $0x44] sm:$0xf]
    %v62 = vld [vmem:[%s1 + $0x48] sm:$0xf]
    %v63 = vld [vmem:[%s1 + $0x4c] sm:$0xf]
    %v64 = vld [vmem:[%s1 + $0x50] sm:$0xf]
    %v65 = vld [vmem:[%s1 + $0x54] sm:$0xf]
    %v66 = vld [vmem:[%s1 + $0x58] sm:$0xf]
    %v67 = vld [vmem:[%s1 + $0x5c] sm:$0xf]
    %v68 = vld [vmem:[%s1 + $0x60] sm:$0xf]
    %v69 = vld [vmem:[%s1 + $0x64] sm:$0xf]
    %v70 = vld [vmem:[%s1 + $0x68] sm:$0xf]
    %v71 = vld [vmem:[%s1 + $0x6c] sm:$0xf]
    %v72 = vld [vmem:[%s1 + $0x70] sm:$0xf]
    %v73 = vld [vmem:[%s1 + $0x74] sm:$0xf]
    %v74 = vld [vmem:[%s1 + $0x78] sm:$0xf]
    %v75 = vld [vmem:[%s1 + $0x7c] sm:$0xf]
    %v76 = vstv %s30
    %v109 = vunpack.c.l.b16 %v44
    %v110 = vunpack.c.l.b16 %v45
    %v111 = vunpack.c.l.b16 %v46
    %v112 = vunpack.c.l.b16 %v47
    %v113 = vunpack.c.l.b16 %v48
    %v114 = vunpack.c.l.b16 %v49
    %v115 = vunpack.c.l.b16 %v50
    %v116 = vunpack.c.l.b16 %v51
    %v117 = vunpack.c.l.b16 %v52
    %v118 = vunpack.c.l.b16 %v53
    %v119 = vunpack.c.l.b16 %v54
    %v120 = vunpack.c.l.b16 %v55
    %v121 = vunpack.c.l.b16 %v56
    %v122 = vunpack.c.l.b16 %v57
    %v123 = vunpack.c.l.b16 %v58
    %v124 = vunpack.c.l.b16 %v59
    %v125 = vunpack.c.l.b16 %v60
    %v126 = vunpack.c.l.b16 %v61
    %v127 = vunpack.c.l.b16 %v62
    %v128 = vunpack.c.l.b16 %v63
    %v129 = vunpack.c.l.b16 %v64
    %v130 = vunpack.c.l.b16 %v65
    %v131 = vunpack.c.l.b16 %v66
    %v132 = vunpack.c.l.b16 %v67
    %v133 = vunpack.c.l.b16 %v68
    %v134 = vunpack.c.l.b16 %v69
    %v135 = vunpack.c.l.b16 %v70
    %v136 = vunpack.c.l.b16 %v71
    %v137 = vunpack.c.l.b16 %v72
    %v138 = vunpack.c.l.b16 %v73
    %v139 = vunpack.c.l.b16 %v74
    %v140 = vunpack.c.l.b16 %v75
    %v141 = vpack.c.b16 %v110, %v109
    %v142 = vpack.c.b16 %v112, %v111
    %v143 = vpack.c.b16 %v114, %v113
    %v144 = vpack.c.b16 %v116, %v115
    %v145 = vpack.c.b16 %v118, %v117
    %v146 = vpack.c.b16 %v120, %v119
    %v147 = vpack.c.b16 %v122, %v121
    %v148 = vpack.c.b16 %v124, %v123
    %v149 = vpack.c.b16 %v126, %v125
    %v150 = vpack.c.b16 %v128, %v127
    %v151 = vpack.c.b16 %v130, %v129
    %v152 = vpack.c.b16 %v132, %v131
    %v153 = vpack.c.b16 %v134, %v133
    %v154 = vpack.c.b16 %v136, %v135
    %v155 = vpack.c.b16 %v138, %v137
    %v156 = vpack.c.b16 %v140, %v139
    %173 = vmatprep.subr.bf16.mxu0 0
    %174 = vmatpush1.bf16.msra.mxu0 %v148
    %175 = vmatprep.subr.bf16.mxu0 0
    %176 = vmatpush1.bf16.msra.mxu0 %v147
    %177 = vmatprep.subr.bf16.mxu0 0
    %178 = vmatpush1.bf16.msra.mxu0 %v146
    %179 = vmatprep.subr.bf16.mxu0 0
    %180 = vmatpush1.bf16.msra.mxu0 %v145
    %181 = vmatprep.subr.bf16.mxu0 0
    %182 = vmatpush1.bf16.msra.mxu0 %v144
    %183 = vmatprep.subr.bf16.mxu0 0
    %184 = vmatpush1.bf16.msra.mxu0 %v143
    %185 = vmatprep.subr.bf16.mxu0 0
    %186 = vmatpush1.bf16.msra.mxu0 %v142
    %187 = vmatprep.subr.bf16.mxu0 0
    %188 = vmatpush1.bf16.msra.mxu0 %v141
    %189 = vmatprep.subr.bf16.mxu0 0
    %190 = vmatpush2.bf16.msra.mxu0 %v156
    %191 = vmatprep.subr.bf16.mxu0 0
    %192 = vmatpush2.bf16.msra.mxu0 %v155
    %193 = vmatprep.subr.bf16.mxu0 0
    %194 = vmatpush2.bf16.msra.mxu0 %v154
    %195 = vmatprep.subr.bf16.mxu0 0
    %196 = vmatpush2.bf16.msra.mxu0 %v153
    %197 = vmatprep.subr.bf16.mxu0 0
    %198 = vmatpush2.bf16.msra.mxu0 %v152
    %199 = vmatprep.subr.bf16.mxu0 0
    %200 = vmatpush2.bf16.msra.mxu0 %v151
    %201 = vmatprep.subr.bf16.mxu0 0
    %202 = vmatpush2.bf16.msra.mxu0 %v150
    %203 = vmatprep.subr.bf16.mxu0 0
    %204 = vmatpush2.bf16.msra.mxu0 %v149
    %205 = vmatprep.mubr.bf16.mxu0 %v43
    %206 = vmatmul.mubr.bf16.gmra.mxu0 %v42
    %v207 = vpop.f32.mrf.mxu0
    %v208 = vadd.f32 %v76, %v207
    %v209 = vpop.f32.mrf.mxu0
    %v210 = vpop.f32.mrf.mxu0
    %v211 = vpop.f32.mrf.mxu0
    %212 = vdwg.mxu0
    %v213 = vmax.f32 %v208, 0.0
    %v214 = vpack.c.bf16 %v213, %v213
    %v215 = vld [vmem:[%s3] sm:$0xff]
    %v216 = vld [vmem:[%s3 + $0x8] sm:$0xff]
    %v217 = vld [vmem:[%s4] sm:$0xf]
    %v219 = vlaneseq
    %v220 = vshrl.u32 %v219, 7
    %v221 = vsub.s32 0, %v220
    %v222 = vrot.slane %v217, %v221
    %v223 = vlaneseq
    %v224 = vshrl.u32 %v223, 7
    %v225 = vsub.s32 1, %v224
    %v226 = vrot.slane %v217, %v225
    %v227 = vlaneseq
    %v228 = vshrl.u32 %v227, 7
    %v229 = vsub.s32 2, %v228
    %v230 = vrot.slane %v217, %v229
    %v231 = vlaneseq
    %v232 = vshrl.u32 %v231, 7
    %v233 = vsub.s32 3, %v232
    %v234 = vrot.slane %v217, %v233
    %v241 = vunpack.c.l.b16 %v215
    %v242 = vunpack.c.h.b16 %v215
    %v243 = vunpack.c.l.b16 %v216
    %v244 = vunpack.c.h.b16 %v216
    %v245 = vpack.c.b16 %v241, %v241
    %v246 = vpack.c.b16 %v242, %v242
    %v247 = vpack.c.b16 %v243, %v243
    %v248 = vpack.c.b16 %v244, %v244
    %vm249 = vcmask 64512
    %v251 = vsel %vm249, %v214, 0
    %vm253 = vcmask 1043456
    %v255 = vsel %vm253, %v245, 0
    %v258 = vsel %vm253, %v246, 0
    %v261 = vsel %vm253, %v247, 0
    %v264 = vsel %vm253, %v248, 0
    %266 = vmatprep.subr.bf16.mxu0 0
    %267 = vmatpush1.bf16.msra.mxu0 0
    %268 = vmatprep.subr.bf16.mxu0 0
    %269 = vmatpush1.bf16.msra.mxu0 0
    %270 = vmatprep.subr.bf16.mxu0 0
    %271 = vmatpush1.bf16.msra.mxu0 0
    %272 = vmatprep.subr.bf16.mxu0 0
    %273 = vmatpush1.bf16.msra.mxu0 0
    %274 = vmatprep.subr.bf16.mxu0 0
    %275 = vmatpush1.bf16.msra.mxu0 0
    %276 = vmatprep.subr.bf16.mxu0 0
    %277 = vmatpush1.bf16.msra.mxu0 0
    %278 = vmatprep.subr.bf16.mxu0 0
    %279 = vmatpush1.bf16.msra.mxu0 0
    %280 = vmatprep.subr.bf16.mxu0 %v258
    %281 = vmatpush1.bf16.msra.mxu0 %v255
    %282 = vmatprep.subr.bf16.mxu0 0
    %283 = vmatpush2.bf16.msra.mxu0 0
    %284 = vmatprep.subr.bf16.mxu0 0
    %285 = vmatpush2.bf16.msra.mxu0 0
    %286 = vmatprep.subr.bf16.mxu0 0
    %287 = vmatpush2.bf16.msra.mxu0 0
    %288 = vmatprep.subr.bf16.mxu0 0
    %289 = vmatpush2.bf16.msra.mxu0 0
    %290 = vmatprep.subr.bf16.mxu0 0
    %291 = vmatpush2.bf16.msra.mxu0 0
    %292 = vmatprep.subr.bf16.mxu0 0
    %293 = vmatpush2.bf16.msra.mxu0 0
    %294 = vmatprep.subr.bf16.mxu0 0
    %295 = vmatpush2.bf16.msra.mxu0 0
    %296 = vmatprep.subr.bf16.mxu0 0
    %297 = vmatpush2.bf16.msra.mxu0 0
    %298 = vmatprep.mubr.bf16.mxu0 0
    %299 = vmatmul.mubr.bf16.gmra.mxu0 %v251
    %v300 = vpop.f32.mrf.mxu0
    %v301 = vadd.f32 %v222, %v300
    %v302 = vpop.f32.mrf.mxu0
    %v303 = vadd.f32 %v226, %v302
    %v304 = vpop.f32.mrf.mxu0
    %v305 = vpop.f32.mrf.mxu0
    %306 = vdwg.mxu0
    %307 = vmatprep.subr.bf16.mxu0 0
    %308 = vmatpush1.bf16.msra.mxu0 0
    %309 = vmatprep.subr.bf16.mxu0 0
    %310 = vmatpush1.bf16.msra.mxu0 0
    %311 = vmatprep.subr.bf16.mxu0 0
    %312 = vmatpush1.bf16.msra.mxu0 0
    %313 = vmatprep.subr.bf16.mxu0 0
    %314 = vmatpush1.bf16.msra.mxu0 0
    %315 = vmatprep.subr.bf16.mxu0 0
    %316 = vmatpush1.bf16.msra.mxu0 0
    %317 = vmatprep.subr.bf16.mxu0 0
    %318 = vmatpush1.bf16.msra.mxu0 0
    %319 = vmatprep.subr.bf16.mxu0 0
    %320 = vmatpush1.bf16.msra.mxu0 0
    %321 = vmatprep.subr.bf16.mxu0 %v264
    %322 = vmatpush1.bf16.msra.mxu0 %v261
    %323 = vmatprep.subr.bf16.mxu0 0
    %324 = vmatpush2.bf16.msra.mxu0 0
    %325 = vmatprep.subr.bf16.mxu0 0
    %326 = vmatpush2.bf16.msra.mxu0 0
    %327 = vmatprep.subr.bf16.mxu0 0
    %328 = vmatpush2.bf16.msra.mxu0 0
    %329 = vmatprep.subr.bf16.mxu0 0
    %330 = vmatpush2.bf16.msra.mxu0 0
    %331 = vmatprep.subr.bf16.mxu0 0
    %332 = vmatpush2.bf16.msra.mxu0 0
    %333 = vmatprep.subr.bf16.mxu0 0
    %334 = vmatpush2.bf16.msra.mxu0 0
    %335 = vmatprep.subr.bf16.mxu0 0
    %336 = vmatpush2.bf16.msra.mxu0 0
    %337 = vmatprep.subr.bf16.mxu0 0
    %338 = vmatpush2.bf16.msra.mxu0 0
    %339 = vmatprep.mubr.bf16.mxu0 0
    %340 = vmatmul.mubr.bf16.gmra.mxu0 %v251
    %v341 = vpop.f32.mrf.mxu0
    %v342 = vadd.f32 %v230, %v341
    %v343 = vpop.f32.mrf.mxu0
    %v344 = vadd.f32 %v234, %v343
    %v345 = vpop.f32.mrf.mxu0
    %v346 = vpop.f32.mrf.mxu0
    %347 = vdwg.mxu0
    %v348 = vmax.f32 %v301, 0.0
    %v349 = vmax.f32 %v303, 0.0
    %v350 = vmax.f32 %v342, 0.0
    %v351 = vmax.f32 %v344, 0.0
    %v352 = vpack.c.bf16 %v348, %v348
    %v353 = vpack.c.bf16 %v349, %v349
    %v354 = vpack.c.bf16 %v350, %v350
    %v355 = vpack.c.bf16 %v351, %v351
    %v356 = vld [vmem:[%s5] sm:$0xf]
    %v357 = vld [vmem:[%s5 + $0x4] sm:$0xf]
    %v358 = vld [vmem:[%s5 + $0x8] sm:$0xf]
    %v359 = vld [vmem:[%s5 + $0xc] sm:$0xf]
    %v360 = vld [vmem:[%s5 + $0x10] sm:$0xf]
    %v361 = vld [vmem:[%s5 + $0x14] sm:$0xf]
    %v362 = vld [vmem:[%s5 + $0x18] sm:$0xf]
    %v363 = vld [vmem:[%s5 + $0x1c] sm:$0xf]
    %v364 = vld [vmem:[%s5 + $0x20] sm:$0xf]
    %v365 = vld [vmem:[%s5 + $0x24] sm:$0xf]
    %v366 = vld [vmem:[%s5 + $0x28] sm:$0xf]
    %v367 = vld [vmem:[%s5 + $0x2c] sm:$0xf]
    %v368 = vld [vmem:[%s5 + $0x30] sm:$0xf]
    %v369 = vld [vmem:[%s5 + $0x34] sm:$0xf]
    %v370 = vld [vmem:[%s5 + $0x38] sm:$0xf]
    %v371 = vld [vmem:[%s5 + $0x3c] sm:$0xf]
    %v372 = vld [vmem:[%s5 + $0x40] sm:$0xf]
    %v373 = vld [vmem:[%s5 + $0x44] sm:$0xf]
    %v374 = vld [vmem:[%s5 + $0x48] sm:$0xf]
    %v375 = vld [vmem:[%s5 + $0x4c] sm:$0xf]
    %v376 = vld [vmem:[%s5 + $0x50] sm:$0xf]
    %v377 = vld [vmem:[%s5 + $0x54] sm:$0xf]
    %v378 = vld [vmem:[%s5 + $0x58] sm:$0xf]
    %v379 = vld [vmem:[%s5 + $0x5c] sm:$0xf]
    %v380 = vld [vmem:[%s5 + $0x60] sm:$0xf]
    %v381 = vld [vmem:[%s5 + $0x64] sm:$0xf]
    %v382 = vld [vmem:[%s5 + $0x68] sm:$0xf]
    %v383 = vld [vmem:[%s5 + $0x6c] sm:$0xf]
    %v384 = vld [vmem:[%s5 + $0x70] sm:$0xf]
    %v385 = vld [vmem:[%s5 + $0x74] sm:$0xf]
    %v386 = vld [vmem:[%s5 + $0x78] sm:$0xf]
    %v387 = vld [vmem:[%s5 + $0x7c] sm:$0xf]
    %v388 = vld [vmem:[%s5 + $0x80] sm:$0xf]
    %v389 = vld [vmem:[%s5 + $0x84] sm:$0xf]
    %v390 = vld [vmem:[%s5 + $0x88] sm:$0xf]
    %v391 = vld [vmem:[%s5 + $0x8c] sm:$0xf]
    %v392 = vld [vmem:[%s5 + $0x90] sm:$0xf]
    %v393 = vld [vmem:[%s5 + $0x94] sm:$0xf]
    %v394 = vld [vmem:[%s5 + $0x98] sm:$0xf]
    %v395 = vld [vmem:[%s5 + $0x9c] sm:$0xf]
    %v396 = vld [vmem:[%s5 + $0xa0] sm:$0xf]
    %v397 = vld [vmem:[%s5 + $0xa4] sm:$0xf]
    %v398 = vld [vmem:[%s5 + $0xa8] sm:$0xf]
    %v399 = vld [vmem:[%s5 + $0xac] sm:$0xf]
    %v400 = vld [vmem:[%s5 + $0xb0] sm:$0xf]
    %v401 = vld [vmem:[%s5 + $0xb4] sm:$0xf]
    %v402 = vld [vmem:[%s5 + $0xb8] sm:$0xf]
    %v403 = vld [vmem:[%s5 + $0xbc] sm:$0xf]
    %v404 = vld [vmem:[%s5 + $0xc0] sm:$0xf]
    %v405 = vld [vmem:[%s5 + $0xc4] sm:$0xf]
    %v406 = vld [vmem:[%s5 + $0xc8] sm:$0xf]
    %v407 = vld [vmem:[%s5 + $0xcc] sm:$0xf]
    %v408 = vld [vmem:[%s5 + $0xd0] sm:$0xf]
    %v409 = vld [vmem:[%s5 + $0xd4] sm:$0xf]
    %v410 = vld [vmem:[%s5 + $0xd8] sm:$0xf]
    %v411 = vld [vmem:[%s5 + $0xdc] sm:$0xf]
    %v412 = vld [vmem:[%s5 + $0xe0] sm:$0xf]
    %v413 = vld [vmem:[%s5 + $0xe4] sm:$0xf]
    %v414 = vld [vmem:[%s5 + $0xe8] sm:$0xf]
    %v415 = vld [vmem:[%s5 + $0xec] sm:$0xf]
    %v416 = vld [vmem:[%s5 + $0xf0] sm:$0xf]
    %v417 = vld [vmem:[%s5 + $0xf4] sm:$0xf]
    %v418 = vld [vmem:[%s5 + $0xf8] sm:$0xf]
    %v419 = vld [vmem:[%s5 + $0xfc] sm:$0xf]
    %v420 = vld [vmem:[%s6] sm:$0x1]
    %v422 = vlaneseq
    %v423 = vshrl.u32 %v422, 7
    %v424 = vsub.s32 0, %v423
    %v425 = vrot.slane %v420, %v424
    %v491 = vunpack.c.l.b16 %v356
    %v492 = vunpack.c.l.b16 %v357
    %v493 = vunpack.c.l.b16 %v358
    %v494 = vunpack.c.l.b16 %v359
    %v495 = vunpack.c.l.b16 %v360
    %v496 = vunpack.c.l.b16 %v361
    %v497 = vunpack.c.l.b16 %v362
    %v498 = vunpack.c.l.b16 %v363
    %v499 = vunpack.c.l.b16 %v364
    %v500 = vunpack.c.l.b16 %v365
    %v501 = vunpack.c.l.b16 %v366
    %v502 = vunpack.c.l.b16 %v367
    %v503 = vunpack.c.l.b16 %v368
    %v504 = vunpack.c.l.b16 %v369
    %v505 = vunpack.c.l.b16 %v370
    %v506 = vunpack.c.l.b16 %v371
    %v507 = vunpack.c.l.b16 %v372
    %v508 = vunpack.c.l.b16 %v373
    %v509 = vunpack.c.l.b16 %v374
    %v510 = vunpack.c.l.b16 %v375
    %v511 = vunpack.c.l.b16 %v376
    %v512 = vunpack.c.l.b16 %v377
    %v513 = vunpack.c.l.b16 %v378
    %v514 = vunpack.c.l.b16 %v379
    %v515 = vunpack.c.l.b16 %v380
    %v516 = vunpack.c.l.b16 %v381
    %v517 = vunpack.c.l.b16 %v382
    %v518 = vunpack.c.l.b16 %v383
    %v519 = vunpack.c.l.b16 %v384
    %v520 = vunpack.c.l.b16 %v385
    %v521 = vunpack.c.l.b16 %v386
    %v522 = vunpack.c.l.b16 %v387
    %v523 = vunpack.c.l.b16 %v388
    %v524 = vunpack.c.l.b16 %v389
    %v525 = vunpack.c.l.b16 %v390
    %v526 = vunpack.c.l.b16 %v391
    %v527 = vunpack.c.l.b16 %v392
    %v528 = vunpack.c.l.b16 %v393
    %v529 = vunpack.c.l.b16 %v394
    %v530 = vunpack.c.l.b16 %v395
    %v531 = vunpack.c.l.b16 %v396
    %v532 = vunpack.c.l.b16 %v397
    %v533 = vunpack.c.l.b16 %v398
    %v534 = vunpack.c.l.b16 %v399
    %v535 = vunpack.c.l.b16 %v400
    %v536 = vunpack.c.l.b16 %v401
    %v537 = vunpack.c.l.b16 %v402
    %v538 = vunpack.c.l.b16 %v403
    %v539 = vunpack.c.l.b16 %v404
    %v540 = vunpack.c.l.b16 %v405
    %v541 = vunpack.c.l.b16 %v406
    %v542 = vunpack.c.l.b16 %v407
    %v543 = vunpack.c.l.b16 %v408
    %v544 = vunpack.c.l.b16 %v409
    %v545 = vunpack.c.l.b16 %v410
    %v546 = vunpack.c.l.b16 %v411
    %v547 = vunpack.c.l.b16 %v412
    %v548 = vunpack.c.l.b16 %v413
    %v549 = vunpack.c.l.b16 %v414
    %v550 = vunpack.c.l.b16 %v415
    %v551 = vunpack.c.l.b16 %v416
    %v552 = vunpack.c.l.b16 %v417
    %v553 = vunpack.c.l.b16 %v418
    %v554 = vunpack.c.l.b16 %v419
    %v555 = vpack.c.b16 %v492, %v491
    %v556 = vpack.c.b16 %v494, %v493
    %v557 = vpack.c.b16 %v496, %v495
    %v558 = vpack.c.b16 %v498, %v497
    %v559 = vpack.c.b16 %v500, %v499
    %v560 = vpack.c.b16 %v502, %v501
    %v561 = vpack.c.b16 %v504, %v503
    %v562 = vpack.c.b16 %v506, %v505
    %v563 = vpack.c.b16 %v508, %v507
    %v564 = vpack.c.b16 %v510, %v509
    %v565 = vpack.c.b16 %v512, %v511
    %v566 = vpack.c.b16 %v514, %v513
    %v567 = vpack.c.b16 %v516, %v515
    %v568 = vpack.c.b16 %v518, %v517
    %v569 = vpack.c.b16 %v520, %v519
    %v570 = vpack.c.b16 %v522, %v521
    %v571 = vpack.c.b16 %v524, %v523
    %v572 = vpack.c.b16 %v526, %v525
    %v573 = vpack.c.b16 %v528, %v527
    %v574 = vpack.c.b16 %v530, %v529
    %v575 = vpack.c.b16 %v532, %v531
    %v576 = vpack.c.b16 %v534, %v533
    %v577 = vpack.c.b16 %v536, %v535
    %v578 = vpack.c.b16 %v538, %v537
    %v579 = vpack.c.b16 %v540, %v539
    %v580 = vpack.c.b16 %v542, %v541
    %v581 = vpack.c.b16 %v544, %v543
    %v582 = vpack.c.b16 %v546, %v545
    %v583 = vpack.c.b16 %v548, %v547
    %v584 = vpack.c.b16 %v550, %v549
    %v585 = vpack.c.b16 %v552, %v551
    %v586 = vpack.c.b16 %v554, %v553
    %619 = vmatprep.subr.bf16.mxu0 0
    %620 = vmatpush1.bf16.msra.mxu0 %v562
    %621 = vmatprep.subr.bf16.mxu0 0
    %622 = vmatpush1.bf16.msra.mxu0 %v561
    %623 = vmatprep.subr.bf16.mxu0 0
    %624 = vmatpush1.bf16.msra.mxu0 %v560
    %625 = vmatprep.subr.bf16.mxu0 0
    %626 = vmatpush1.bf16.msra.mxu0 %v559
    %627 = vmatprep.subr.bf16.mxu0 0
    %628 = vmatpush1.bf16.msra.mxu0 %v558
    %629 = vmatprep.subr.bf16.mxu0 0
    %630 = vmatpush1.bf16.msra.mxu0 %v557
    %631 = vmatprep.subr.bf16.mxu0 0
    %632 = vmatpush1.bf16.msra.mxu0 %v556
    %633 = vmatprep.subr.bf16.mxu0 0
    %634 = vmatpush1.bf16.msra.mxu0 %v555
    %635 = vmatprep.subr.bf16.mxu0 0
    %636 = vmatpush2.bf16.msra.mxu0 %v570
    %637 = vmatprep.subr.bf16.mxu0 0
    %638 = vmatpush2.bf16.msra.mxu0 %v569
    %639 = vmatprep.subr.bf16.mxu0 0
    %640 = vmatpush2.bf16.msra.mxu0 %v568
    %641 = vmatprep.subr.bf16.mxu0 0
    %642 = vmatpush2.bf16.msra.mxu0 %v567
    %643 = vmatprep.subr.bf16.mxu0 0
    %644 = vmatpush2.bf16.msra.mxu0 %v566
    %645 = vmatprep.subr.bf16.mxu0 0
    %646 = vmatpush2.bf16.msra.mxu0 %v565
    %647 = vmatprep.subr.bf16.mxu0 0
    %648 = vmatpush2.bf16.msra.mxu0 %v564
    %649 = vmatprep.subr.bf16.mxu0 0
    %650 = vmatpush2.bf16.msra.mxu0 %v563
    %651 = vmatprep.mubr.bf16.mxu0 %v353
    %652 = vmatmul.mubr.bf16.gmra.mxu0 %v352
    %v653 = vpop.f32.mrf.mxu0
    %v654 = vadd.f32 %v425, %v653
    %v655 = vpop.f32.mrf.mxu0
    %v656 = vpop.f32.mrf.mxu0
    %v657 = vpop.f32.mrf.mxu0
    %658 = vdwg.mxu0
    %659 = vmatprep.subr.bf16.mxu0 0
    %660 = vmatpush1.bf16.msra.mxu0 %v578
    %661 = vmatprep.subr.bf16.mxu0 0
    %662 = vmatpush1.bf16.msra.mxu0 %v577
    %663 = vmatprep.subr.bf16.mxu0 0
    %664 = vmatpush1.bf16.msra.mxu0 %v576
    %665 = vmatprep.subr.bf16.mxu0 0
    %666 = vmatpush1.bf16.msra.mxu0 %v575
    %667 = vmatprep.subr.bf16.mxu0 0
    %668 = vmatpush1.bf16.msra.mxu0 %v574
    %669 = vmatprep.subr.bf16.mxu0 0
    %670 = vmatpush1.bf16.msra.mxu0 %v573
    %671 = vmatprep.subr.bf16.mxu0 0
    %672 = vmatpush1.bf16.msra.mxu0 %v572
    %673 = vmatprep.subr.bf16.mxu0 0
    %674 = vmatpush1.bf16.msra.mxu0 %v571
    %675 = vmatprep.subr.bf16.mxu0 0
    %676 = vmatpush2.bf16.msra.mxu0 %v586
    %677 = vmatprep.subr.bf16.mxu0 0
    %678 = vmatpush2.bf16.msra.mxu0 %v585
    %679 = vmatprep.subr.bf16.mxu0 0
    %680 = vmatpush2.bf16.msra.mxu0 %v584
    %681 = vmatprep.subr.bf16.mxu0 0
    %682 = vmatpush2.bf16.msra.mxu0 %v583
    %683 = vmatprep.subr.bf16.mxu0 0
    %684 = vmatpush2.bf16.msra.mxu0 %v582
    %685 = vmatprep.subr.bf16.mxu0 0
    %686 = vmatpush2.bf16.msra.mxu0 %v581
    %687 = vmatprep.subr.bf16.mxu0 0
    %688 = vmatpush2.bf16.msra.mxu0 %v580
    %689 = vmatprep.subr.bf16.mxu0 0
    %690 = vmatpush2.bf16.msra.mxu0 %v579
    %691 = vmatprep.mubr.bf16.mxu0 %v355
    %692 = vmatmul.mubr.bf16.gmra.mxu0 %v354
    %v693 = vpop.f32.mrf.mxu0
    %v694 = vadd.f32 %v654, %v693
    %v695 = vpop.f32.mrf.mxu0
    %v696 = vpop.f32.mrf.mxu0
    %v697 = vpop.f32.mrf.mxu0
    %698 = vdwg.mxu0
    %699 = vst [vmem:[#allocation3] sm:$0x3] %v694
    // Predicated region
    $region30: #{_cell_encoder_pallas.1} parent=1 // pred_check
      _
    $region31: #{_cell_encoder_pallas.1} parent=1 // pred_check_branch
      %701 = sbr.rel (0) target = $region33
    $region32: #{_cell_encoder_pallas.1} parent=1 // pred_region
      %s703 = ssub.s32 32, 32
      %704 = vsyncadd [#allocation4], %s703
      %s706 = sshll.u32 [#allocation3], 4
      %s707 = int_to_ptr.vmem [resolvable:$true] %s706
      %709 = dma.vmem_to_hbm [thread:$0]  %s707, 32, %s7, [#allocation4]
    $region33: #{_cell_encoder_pallas.1} parent=1 // pred_fallthru
      _
    // Predicated region
    $region34: #{_cell_encoder_pallas.1} parent=1 // pred_check
      _
    $region35: #{_cell_encoder_pallas.1} parent=1 // pred_check_branch
      %711 = sbr.rel (0) target = $region37
    $region36: #{_cell_encoder_pallas.1} parent=1 // pred_region
      %712 = dma.done [#allocation4], 32
    $region37: #{_cell_encoder_pallas.1} parent=1 // pred_fallthru
      _
    %713 = vsyncpa [#allocation4], 1

</llo_original>
